<compile_context>
chip_gen: v6e
topology: v6e:2x2x1
jax: 0.10.0
libtpu: 0.0.40
codegen_flags: <defaults>
</compile_context>

<pallas_src>
import jax
import jax.numpy as jnp
from jax.experimental import pallas as pl
from jax.experimental.pallas import tpu as pltpu


def _rope_kernel(x_ref, cos_ref, sin_ref, o_ref):
    # x_ref/o_ref: (GH, TS, D) tile of x viewed as (B*H, S, D).
    # cos_ref:     (TS, D) cos table rows for this sequence tile.
    # sin_ref:     (TS, D) sign-folded sin table: concat(-sin_lo, sin_hi).
    x = x_ref[...]
    half = x.shape[-1] // 2
    # rotate_half's data movement is a single lane rotation by D/2 (rides the otherwise
    # idle XLU slot); its sign lives in sin_ref, so no negate/select per element.
    rot = pltpu.roll(x, shift=half, axis=2)
    o_ref[...] = x * cos_ref[...][None] + rot * sin_ref[...][None]


def _vmem_capacity_bytes(default=128 * 1024 * 1024):
    # Generation-aware VMEM size (64 MiB on v7x, 128 MiB on v5e/v6e).
    try:
        cap = getattr(pltpu.get_tpu_info(), "vmem_capacity_bytes", None)
        return int(cap) if cap else default
    except Exception:
        return default


def _pick_tiles(bh, s, d, itemsize, block_bytes):
    """Pick (GH, TS): GH heads x TS sequence rows per block.

    Either GH whole sequences per block (TS == S), or GH == 1 and TS a sublane-aligned
    divisor of S.  The last two block dims are therefore always (multiple-of-sublane, D)
    or equal to the full array dims, so the (8, 128) rule holds for any S.
    """
    sub = max(8, 32 // itemsize)                       # 8 rows f32, 16 bf16, 32 int8
    seq_bytes = s * d * itemsize
    if seq_bytes <= block_bytes:
        gmax = max(1, block_bytes // seq_bytes)
        cand = [g for g in range(1, bh + 1) if bh % g == 0 and g <= gmax]
        # Prefer an even grid with >= 4 steps so v7x's two TensorCores stay balanced
        # (negligible cost on single-core v5e/v6e at these sizes).
        pref = [g for g in cand if (bh // g) % 2 == 0 and bh // g >= 4]
        if not pref:
            pref = [g for g in cand if (bh // g) % 2 == 0]
        return (max(pref) if pref else max(cand)), s
    # Long sequence: one head at a time, largest sublane-aligned divisor of S under the cap.
    rcap = max(sub, block_bytes // (d * itemsize))
    ts = (rcap // sub) * sub
    while ts >= sub:
        if s % ts == 0:
            return 1, ts
        ts -= sub
    # TODO(synk): pad S to a sublane multiple and mask the tail for pathological (prime) S;
    # a full-sequence block is always layout-legal but may exceed the byte budget.
    return 1, s


def llama_rotary_embedding_ext(x, cos, sin, *, target_block_bytes=None):
    """x: [B, H, S, D]; cos/sin: [S', D] tables with S' >= S (as produced by make_cos_sin)."""
    B, H, S, D = x.shape
    BH, half = B * H, D // 2
    dtype = x.dtype
    itemsize = jnp.dtype(dtype).itemsize

    # Mirror forward(): slice cached tables to this seq_len, cast to x dtype, and fold
    # rotate_half's sign into sin:  rotate_half(x)*sin == roll(x, D/2)*concat(-sin_lo, sin_hi).
    cos_t = cos[:S].astype(dtype)
    sin_t = jnp.concatenate([-sin[:S, :half], sin[:S, half:]], axis=-1).astype(dtype)

    # Generation-aware budgeting: x + out are double-buffered (4 block-sized buffers) and
    # the two tables add at most 4 table-sized buffers, so budget the x/out block at ~1/10
    # of usable VMEM, capped at 8 MiB (=> ~4-5 MiB on v7x, 8 MiB on 128 MiB v5e/v6e parts).
    vmem_cap = _vmem_capacity_bytes()
    usable = vmem_cap - (16 << 20)
    if target_block_bytes is None:
        target_block_bytes = max(1 << 20, min(8 << 20, usable // 10))

    GH, TS = _pick_tiles(BH, S, D, itemsize, target_block_bytes)
    xf = x.reshape(BH, S, D)

    # Grid: sequence tiles outer, head groups inner, so a given table tile stays resident
    # across all head groups before moving on.  Every output block is written exactly once
    # -> both axes are "parallel" (megacore-shardable on v7x).
    grid = (S // TS, BH // GH)
    x_spec = pl.BlockSpec((GH, TS, D), lambda j, i: (i, j, 0))
    tables_resident = TS == S          # constant block index -> fetched once
    if tables_resident:
        # Single-buffer the grid-constant tables: frees 2x table bytes of VMEM.
        tab_spec = pl.BlockSpec((TS, D), lambda j, i: (j, 0), pipeline_mode=pl.Buffered(1))
    else:
        tab_spec = pl.BlockSpec((TS, D), lambda j, i: (j, 0))

    x_block = GH * TS * D * itemsize
    tab_block = TS * D * itemsize
    tab_bufs = 2 if tables_resident else 4
    footprint = 4 * x_block + tab_bufs * tab_block
    # Leave headroom for compiler-internal scratch; never request the full physical VMEM
    # (64 MiB == all of a v7x TensorCore's VMEM).
    vmem_limit = int(min(max(32 << 20, footprint + (8 << 20)), vmem_cap - (8 << 20)))

    out = pl.pallas_call(
        _rope_kernel,
        out_shape=jax.ShapeDtypeStruct((BH, S, D), dtype),
        grid_spec=pltpu.PrefetchScalarGridSpec(
            num_scalar_prefetch=0,
            grid=grid,
            in_specs=[x_spec, tab_spec, tab_spec],
            out_specs=x_spec,
        ),
        compiler_params=pltpu.CompilerParams(
            dimension_semantics=("parallel", "parallel"),
            vmem_limit_bytes=vmem_limit,
        ),
    )(xf, cos_t, sin_t)
    return out.reshape(B, H, S, D)


def make_cos_sin(dim, seq_len, base=10000.0, alpha=8.0):
    # Matches LlamaRotaryEmbeddingExt.__init__ (NTK alpha scaling of the base).
    # TODO(synk): dynamic cache regrowth (seq_len > max_position_embeddings) in the PyTorch
    # module is a host-side buffer rebuild; here, simply call make_cos_sin with the new length.
    base = base * alpha ** (dim / (dim - 2))
    inv_freq = 1.0 / (base ** (jnp.arange(0, dim, 2, dtype=jnp.float32) / dim))   # (dim//2,)
    t = jnp.arange(seq_len, dtype=jnp.float32)                                     # (S,)
    freqs = jnp.einsum("i,j->ij", t, inv_freq)                                     # (S, dim//2)
    emb = jnp.concatenate([freqs, freqs], axis=-1)                                 # (S, dim)
    return jnp.cos(emb), jnp.sin(emb)


def _reference(x, cos, sin):
    cos = cos.astype(x.dtype)[None, None]
    sin = sin.astype(x.dtype)[None, None]
    x1, x2 = x[..., : x.shape[-1] // 2], x[..., x.shape[-1] // 2 :]
    rot = jnp.concatenate([-x2, x1], axis=-1)
    return x * cos + rot * sin


if __name__ == "__main__":
    B, H, S, D = 2, 4, 8, 128
    key = jax.random.PRNGKey(0)
    x = jax.random.normal(key, (B, H, S, D), dtype=jnp.float32)

    cos, sin = make_cos_sin(D, S)

    out = llama_rotary_embedding_ext(x, cos, sin)
    out = jax.block_until_ready(out)

    ref = _reference(x, cos, sin)
    assert out.shape == x.shape and out.dtype == x.dtype
    assert jnp.allclose(out, ref, atol=1e-5, rtol=1e-5)
    print("KERNEL_OK")
</pallas_src>

<mosaic_0001>
module attributes {stable_mosaic.version = 11 : i64} {
  func.func @_rope_kernel(%arg0: i32, %arg1: i32, %arg2: memref<2x8x128xf32, #tpu.memory_space<vmem>>, %arg3: memref<8x128xf32, #tpu.memory_space<vmem>>, %arg4: memref<8x128xf32, #tpu.memory_space<vmem>>, %arg5: memref<2x8x128xf32, #tpu.memory_space<vmem>>) attributes {dimension_semantics = [#tpu.dimension_semantics<parallel>, #tpu.dimension_semantics<parallel>], iteration_bounds = array<i64: 1, 4>, scalar_prefetch = 0 : i64, scratch_operands = 0 : i64, tpu.core_type = #tpu.core_type<tc>, window_params = [{transform_indices = @transform_0, window_bounds = array<i64: 2, 8, 128>}, {pipeline_mode = #tpu.pipeline_mode<synchronous>, transform_indices = @transform_1, window_bounds = array<i64: 8, 128>}, {pipeline_mode = #tpu.pipeline_mode<synchronous>, transform_indices = @transform_2, window_bounds = array<i64: 8, 128>}, {transform_indices = @transform_3, window_bounds = array<i64: 2, 8, 128>}]} {
    %c0 = arith.constant 0 : index
    %c0_0 = arith.constant 0 : index
    %c0_1 = arith.constant 0 : index
    %0 = vector.load %arg2[%c0, %c0_0, %c0_1] : memref<2x8x128xf32, #tpu.memory_space<vmem>>, vector<2x8x128xf32>
    %c64_i32 = arith.constant 64 : i32
    %1 = tpu.dynamic_rotate %0 by %c64_i32 dim 2 : vector<2x8x128xf32>, i32 -> vector<2x8x128xf32>
    %c0_2 = arith.constant 0 : index
    %c0_3 = arith.constant 0 : index
    %2 = vector.load %arg3[%c0_2, %c0_3] : memref<8x128xf32, #tpu.memory_space<vmem>>, vector<8x128xf32>
    %3 = vector.shape_cast %2 : vector<8x128xf32> to vector<1x8x128xf32>
    %4 = vector.broadcast %3 : vector<1x8x128xf32> to vector<2x8x128xf32>
    %5 = arith.mulf %0, %4 : vector<2x8x128xf32>
    %c0_4 = arith.constant 0 : index
    %c0_5 = arith.constant 0 : index
    %6 = vector.load %arg4[%c0_4, %c0_5] : memref<8x128xf32, #tpu.memory_space<vmem>>, vector<8x128xf32>
    %7 = vector.shape_cast %6 : vector<8x128xf32> to vector<1x8x128xf32>
    %8 = vector.broadcast %7 : vector<1x8x128xf32> to vector<2x8x128xf32>
    %9 = arith.mulf %1, %8 : vector<2x8x128xf32>
    %10 = arith.addf %5, %9 : vector<2x8x128xf32>
    %c0_6 = arith.constant 0 : index
    %c0_7 = arith.constant 0 : index
    %c0_8 = arith.constant 0 : index
    %11 = vector.load %arg5[%c0_6, %c0_7, %c0_8] : memref<2x8x128xf32, #tpu.memory_space<vmem>>, vector<2x8x128xf32>
    tpu.vector_store %arg5[%c0_6, %c0_7, %c0_8], %10 {strides = array<i32>} : memref<2x8x128xf32, #tpu.memory_space<vmem>>, vector<2x8x128xf32>,
    return
  }
  func.func @transform_0(%arg0: i32, %arg1: i32) -> (i32, i32, i32) {
    %c0_i32 = arith.constant 0 : i32
    %c0_i32_0 = arith.constant 0 : i32
    return %arg1, %arg0, %c0_i32 : i32, i32, i32
  }
  func.func @transform_1(%arg0: i32, %arg1: i32) -> (i32, i32) {
    %c0_i32 = arith.constant 0 : i32
    %c0_i32_0 = arith.constant 0 : i32
    return %arg0, %c0_i32 : i32, i32
  }
  func.func @transform_2(%arg0: i32, %arg1: i32) -> (i32, i32) {
    %c0_i32 = arith.constant 0 : i32
    %c0_i32_0 = arith.constant 0 : i32
    return %arg0, %c0_i32 : i32, i32
  }
  func.func @transform_3(%arg0: i32, %arg1: i32) -> (i32, i32, i32) {
    %c0_i32 = arith.constant 0 : i32
    %c0_i32_0 = arith.constant 0 : i32
    return %arg1, %arg0, %c0_i32 : i32, i32, i32
  }
}

</mosaic_0001>

<llo_original>
// kernel: tpu_custom_call.1
$region0: #{tpu_custom_call.1}
  #allocation0 [shape = 'u32[]', space=smem, size = 0x4, offset = 0x4, fixed_abs, tag = 'smem constant byte address 0x4 - core index']
  #allocation1 [shape = 'u32[144,128]{1,0:T(1,128)}', space=vmem, size = 0x12000, scoped, tag = 'internal scratch']
  %s0 = inlined_call_operand.hbm [shape: f32[8,8,128], index: 0, kind: input, shape index: {}]
  %s1 = inlined_call_operand.hbm [shape: f32[8,128], index: 1, kind: input, shape index: {}]
  %s2 = inlined_call_operand.hbm [shape: f32[8,128], index: 2, kind: input, shape index: {}]
  %s3 = inlined_call_operand.hbm [shape: f32[8,8,128], index: 3, kind: output, shape index: {}]
  %s4 = sld [smem:[#allocation0]]
  $region57: #{tpu_custom_call.1} parent=0
    _
  %s6 = ssub.s32 1, %s4
  %s7 = scalar_select 0, %s6, %s4
  $region1: #{tpu_custom_call.1} parent=0
    #allocation2 [shape = 'u8[16384]{0}', space=vmem, size = 0x4000, scoped, tag = 'input window, operand 0']
    #allocation3 [shape = 's32[2]{0}', space=sflag, size = 0x8, scoped, tag = 'scoped memory for tpu_custom_call.1']
    #allocation4 [shape = 's32[2]{0}', space=sflag, size = 0x8, scoped, tag = 'scoped memory for tpu_custom_call.1']
    #allocation5 [shape = 'u8[4096]{0}', space=vmem, size = 0x1000, scoped, tag = 'input window, operand 1, single buffered']
    #allocation6 [shape = 's32[1]{0}', space=sflag, size = 0x4, scoped, tag = 'scoped memory for tpu_custom_call.1']
    #allocation7 [shape = 'u8[4096]{0}', space=vmem, size = 0x1000, scoped, tag = 'input window, operand 2, single buffered']
    #allocation8 [shape = 'u8[16384]{0}', space=vmem, size = 0x4000, scoped, tag = 'output window, operand 0']
    %8 = vsyncpa [#allocation3], 0
    %s9 = scalar_lea.sflag [#allocation3], 1
    %10 = vsyncpa %s9, 0
    %11 = vsyncpa [#allocation6], 0
    %12 = vsyncpa [#allocation4], 0
    %s13 = scalar_lea.sflag [#allocation4], 1
    %14 = vsyncpa %s13, 0
    loop: start=0, step=1, limit=6
    $region2: #{tpu_custom_call.1} parent=1 // loop_pre_header
      _
    $region3: #{tpu_custom_call.1} parent=1 // loop_header
      %s16 = sphi 0, %s20
      %p17 = scmp.ge.s32.totalorder %s16, 6
      %s23 = sphi 0, %s35
      %s24 = sphi 0, %s31
      %s25 = sphi 0, %s23
      %s26 = sphi 0, %s24
      %s27 = sphi 0, %s25
      %s28 = sphi 0, %s26
      %s40 = sphi 0, %s42
      %s43 = sphi 0, %s40
      %s44 = sphi 0, %s43
      %s60 = sphi 0, %s44
      %s66 = sphi 0, %s68
      %s69 = sphi 0, %s66
      %s70 = sphi 0, %s69
      %s86 = sphi 0, %s70
      %s92 = sphi 0, %s94
      %s95 = sphi 0, %s92
      %s96 = sphi 0, %s95
      %s112 = sphi 0, %s96
      %s120 = sphi 0, %s122
      %s123 = sphi 0, %s120
      %s124 = sphi 0, %s123
      %s140 = sphi 0, %s124
    $region4: #{tpu_custom_call.1} parent=1 // loop_header_branch
      %19 = sbr.rel (%p17) target = $region8
    $region5: #{tpu_custom_call.1} parent=1 // loop_body
      %s21 = ssub.s32 %s16, 1
      %s22 = ssub.s32 %s16, 2
      %s29 = sadd.s32 1, %s24
      %p30 = scmp.ge.s32.totalorder %s29, 4
      %s31 = scalar_select %p30, 0, %s29
      %s32 = sadd.s32 1, %s23
      %s33 = scalar_select %p30, %s32, %s23
      %p34 = scmp.ge.s32.totalorder %s33, 1
      %s35 = scalar_select %p34, 0, %s33
      %s36 = ssub.s32 %s24, %s31
      %s37 = ssub.s32 %s23, %s35
      %s38 = sor.u32 %s36, %s37
      %p39 = scmp.eq.s32.totalorder %s38, 0
      %s41 = sadd.s32 %s40, 1
      %s42 = scalar_select %p39, %s40, %s41
      %p45 = pneg %p39
      %p46 = scmp.eq.s32.totalorder %s16, 3
      %p47 = por %p45, %p46
      %p48 = scmp.ne.s32.totalorder %s40, %s43
      %p49 = scmp.eq.s32.totalorder %s16, 0
      %p50 = por %p48, %p49
      %p51 = scmp.ne.s32.totalorder %s40, %s43
      %p52 = scmp.eq.s32.totalorder %s21, 3
      %p53 = por %p51, %p52
      %p54 = scmp.ne.s32.totalorder %s43, %s44
      %p55 = scmp.eq.s32.totalorder %s21, 0
      %p56 = por %p54, %p55
      %p57 = scmp.ne.s32.totalorder %s43, %s44
      %p58 = scmp.eq.s32.totalorder %s22, 3
      %p59 = por %p57, %p58
      %p61 = scmp.ne.s32.totalorder %s44, %s60
      %p62 = scmp.eq.s32.totalorder %s22, 0
      %p63 = por %p61, %p62
      %s64 = ssub.s32 %s23, %s35
      %p65 = scmp.eq.s32.totalorder %s64, 0
      %s67 = sadd.s32 %s66, 1
      %s68 = scalar_select %p65, %s66, %s67
      %p71 = pneg %p65
      %p72 = scmp.eq.s32.totalorder %s16, 3
      %p73 = por %p71, %p72
      %p74 = scmp.ne.s32.totalorder %s66, %s69
      %p75 = scmp.eq.s32.totalorder %s16, 0
      %p76 = por %p74, %p75
      %p77 = scmp.ne.s32.totalorder %s66, %s69
      %p78 = scmp.eq.s32.totalorder %s21, 3
      %p79 = por %p77, %p78
      %p80 = scmp.ne.s32.totalorder %s69, %s70
      %p81 = scmp.eq.s32.totalorder %s21, 0
      %p82 = por %p80, %p81
      %p83 = scmp.ne.s32.totalorder %s69, %s70
      %p84 = scmp.eq.s32.totalorder %s22, 3
      %p85 = por %p83, %p84
      %p87 = scmp.ne.s32.totalorder %s70, %s86
      %p88 = scmp.eq.s32.totalorder %s22, 0
      %p89 = por %p87, %p88
      %s90 = ssub.s32 %s23, %s35
      %p91 = scmp.eq.s32.totalorder %s90, 0
      %s93 = sadd.s32 %s92, 1
      %s94 = scalar_select %p91, %s92, %s93
      %p97 = pneg %p91
      %p98 = scmp.eq.s32.totalorder %s16, 3
      %p99 = por %p97, %p98
      %p100 = scmp.ne.s32.totalorder %s92, %s95
      %p101 = scmp.eq.s32.totalorder %s16, 0
      %p102 = por %p100, %p101
      %p103 = scmp.ne.s32.totalorder %s92, %s95
      %p104 = scmp.eq.s32.totalorder %s21, 3
      %p105 = por %p103, %p104
      %p106 = scmp.ne.s32.totalorder %s95, %s96
      %p107 = scmp.eq.s32.totalorder %s21, 0
      %p108 = por %p106, %p107
      %p109 = scmp.ne.s32.totalorder %s95, %s96
      %p110 = scmp.eq.s32.totalorder %s22, 3
      %p111 = por %p109, %p110
      %p113 = scmp.ne.s32.totalorder %s96, %s112
      %p114 = scmp.eq.s32.totalorder %s22, 0
      %p115 = por %p113, %p114
      %s116 = ssub.s32 %s24, %s31
      %s117 = ssub.s32 %s23, %s35
      %s118 = sor.u32 %s116, %s117
      %p119 = scmp.eq.s32.totalorder %s118, 0
      %s121 = sadd.s32 %s120, 1
      %s122 = scalar_select %p119, %s120, %s121
      %p125 = pneg %p119
      %p126 = scmp.eq.s32.totalorder %s16, 3
      %p127 = por %p125, %p126
      %p128 = scmp.ne.s32.totalorder %s120, %s123
      %p129 = scmp.eq.s32.totalorder %s16, 0
      %p130 = por %p128, %p129
      %p131 = scmp.ne.s32.totalorder %s120, %s123
      %p132 = scmp.eq.s32.totalorder %s21, 3
      %p133 = por %p131, %p132
      %p134 = scmp.ne.s32.totalorder %s123, %s124
      %p135 = scmp.eq.s32.totalorder %s21, 0
      %p136 = por %p134, %p135
      %p137 = scmp.ne.s32.totalorder %s123, %s124
      %p138 = scmp.eq.s32.totalorder %s22, 3
      %p139 = por %p137, %p138
      %p141 = scmp.ne.s32.totalorder %s124, %s140
      %p142 = scmp.eq.s32.totalorder %s22, 0
      %p143 = por %p141, %p142
      %p144 = scmp.le.s32.totalorder 1, %s16
      %p145 = scmp.lt.s32.totalorder %s16, 5
      %p146 = pnand %p144, %p145
      %p147 = pneg %p146
      // Predicated region
      $region9: #{tpu_custom_call.1} parent=5 // pred_check
        _
      $region10: #{tpu_custom_call.1} parent=5 // pred_check_branch
        %149 = sbr.rel (%p146) target = $region12
      $region11: #{tpu_custom_call.1} parent=5 // pred_region
        %s150 = ssub.s32 %s16, 1
        // Predicated region
        $region13: #{tpu_custom_call.1} parent=11 // pred_check
          %p151 = pneg %p82
        $region14: #{tpu_custom_call.1} parent=11 // pred_check_branch
          %153 = sbr.rel (%p151) target = $region16
        $region15: #{tpu_custom_call.1} parent=11 // pred_region
          %s155 = ssub.s32 128, 128
          %156 = vsyncadd [#allocation6], %s155
          %s157 = smul.addr %s25, 128
          %s158 = scalar_lea.hbm %s1, %s157
          %s160 = sshll.u32 [#allocation5], 4
          %s161 = int_to_ptr.vmem [resolvable:$true] %s160
          %163 = dma.hbm_to_vmem [thread:$0]  %s158, 128, %s161, [#allocation6]
        $region16: #{tpu_custom_call.1} parent=11 // pred_fallthru
          _
        // Predicated region
        $region17: #{tpu_custom_call.1} parent=11 // pred_check
          %p164 = pneg %p108
        $region18: #{tpu_custom_call.1} parent=11 // pred_check_branch
          %166 = sbr.rel (%p164) target = $region20
        $region19: #{tpu_custom_call.1} parent=11 // pred_region
          %s168 = ssub.s32 128, 128
          %169 = vsyncadd [#allocation6], %s168
          %s170 = smul.addr %s25, 128
          %s171 = scalar_lea.hbm %s2, %s170
          %s173 = sshll.u32 [#allocation7], 4
          %s174 = int_to_ptr.vmem [resolvable:$true] %s173
          %176 = dma.hbm_to_vmem [thread:$0]  %s171, 128, %s174, [#allocation6]
        $region20: #{tpu_custom_call.1} parent=11 // pred_fallthru
          _
      $region12: #{tpu_custom_call.1} parent=5 // pred_fallthru
        _
      %p177 = scmp.lt.s32.totalorder %s16, 4
      // Predicated region
      $region21: #{tpu_custom_call.1} parent=5 // pred_check
        %p178 = pneg %p177
      $region22: #{tpu_custom_call.1} parent=5 // pred_check_branch
        %180 = sbr.rel (%p178) target = $region24
      $region23: #{tpu_custom_call.1} parent=5 // pred_region
        // Predicated region
        $region25: #{tpu_custom_call.1} parent=23 // pred_check
          %p181 = pneg %p50
        $region26: #{tpu_custom_call.1} parent=23 // pred_check_branch
          %183 = sbr.rel (%p181) target = $region28
        $region27: #{tpu_custom_call.1} parent=23 // pred_region
          %s184 = sand.u32 %s40, 1
          %s185 = scalar_lea.sflag [#allocation3], %s184
          %s186 = sand.u32 %s40, 1
          %s187 = smul.addr %s186, 16
          %s188 = scalar_lea.vmem [#allocation2], %s187
          %s189 = smul.u32 2, %s24
          %s191 = ssub.s32 256, 256
          %192 = vsyncadd %s185, %s191
          %s193 = sadd.s32 %s23, %s189
          %s194 = smul.addr %s193, 128
          %s195 = scalar_lea.hbm %s0, %s194
          %s196 = sshll.u32 %s188, 4
          %s197 = int_to_ptr.vmem [resolvable:$true] %s196
          %202 = dma.hbm_to_vmem [thread:$0]  %s195, 256, %s197, %s185, 128, 128, 8
        $region28: #{tpu_custom_call.1} parent=23 // pred_fallthru
          _
      $region24: #{tpu_custom_call.1} parent=5 // pred_fallthru
        _
      %p203 = scmp.le.s32.totalorder 1, %s16
      %p204 = scmp.lt.s32.totalorder %s16, 5
      %p205 = pnand %p203, %p204
      %p206 = pneg %p205
      // Predicated region
      $region29: #{tpu_custom_call.1} parent=5 // pred_check
        _
      $region30: #{tpu_custom_call.1} parent=5 // pred_check_branch
        %208 = sbr.rel (%p205) target = $region32
      $region31: #{tpu_custom_call.1} parent=5 // pred_region
        %s209 = ssub.s32 %s16, 1
        %s210 = sand.u32 %s43, 1
        %s211 = scalar_lea.sflag [#allocation3], %s210
        %s212 = sand.u32 %s43, 1
        %s213 = smul.addr %s212, 16
        %s214 = scalar_lea.vmem [#allocation2], %s213
        // Predicated region
        $region33: #{tpu_custom_call.1} parent=31 // pred_check
          %p215 = pneg %p56
        $region34: #{tpu_custom_call.1} parent=31 // pred_check_branch
          %217 = sbr.rel (%p215) target = $region36
        $region35: #{tpu_custom_call.1} parent=31 // pred_region
          %218 = dma.done %s211, 256
        $region36: #{tpu_custom_call.1} parent=31 // pred_fallthru
          _
        // Predicated region
        $region37: #{tpu_custom_call.1} parent=31 // pred_check
          %p219 = pneg %p82
        $region38: #{tpu_custom_call.1} parent=31 // pred_check_branch
          %221 = sbr.rel (%p219) target = $region40
        $region39: #{tpu_custom_call.1} parent=31 // pred_region
          %222 = dma.done [#allocation6], 128
        $region40: #{tpu_custom_call.1} parent=31 // pred_fallthru
          _
        // Predicated region
        $region41: #{tpu_custom_call.1} parent=31 // pred_check
          %p223 = pneg %p108
        $region42: #{tpu_custom_call.1} parent=31 // pred_check_branch
          %225 = sbr.rel (%p223) target = $region44
        $region43: #{tpu_custom_call.1} parent=31 // pred_region
          %226 = dma.done [#allocation6], 128
        $region44: #{tpu_custom_call.1} parent=31 // pred_fallthru
          _
        %s227 = sand.u32 %s43, 1
        %s228 = scalar_lea.sflag [#allocation3], %s227
        %s229 = sand.u32 %s43, 1
        %s230 = smul.addr %s229, 16
        %s231 = scalar_lea.vmem [#allocation2], %s230
        %p232 = pneg %p56
        %p233 = pneg %p53
        %p234 = pneg %p82
        %p235 = pneg %p79
        %p236 = pneg %p108
        %p237 = pneg %p105
        %p238 = pneg %p136
        %p239 = pneg %p133
        %s240 = sand.u32 %s123, 1
        %s241 = scalar_lea.sflag [#allocation4], %s240
        %s242 = sand.u32 %s123, 1
        %s243 = smul.addr %s242, 16
        %s244 = scalar_lea.vmem [#allocation8], %s243
        %s245 = smul.u32 2, %s26
        %s246 = smul.u32 2, %s26
        %v247 = vld [vmem:[%s214] sm:$0xff]
        %v248 = vld [vmem:[%s214 + $0x8] sm:$0xff]
        %249 = vrot.lane.b32.xlu0 %v247, 64
        %v250 = vpop.permute.xlu0 %249
        %251 = vrot.lane.b32.xlu0 %v248, 64
        %v252 = vpop.permute.xlu0 %251
        %v253 = vld [vmem:[#allocation5] sm:$0xff]
        %v254 = vmul.f32 %v247, %v253
        %v255 = vmul.f32 %v248, %v253
        %v256 = vld [vmem:[#allocation7] sm:$0xff]
        %v257 = vmul.f32 %v250, %v256
        %v258 = vmul.f32 %v252, %v256
        %v259 = vadd.f32 %v254, %v257
        %v260 = vadd.f32 %v255, %v258
        %261 = vst [vmem:[%s244] sm:$0xff] %v259
        %262 = vst [vmem:[%s244 + $0x8] sm:$0xff] %v260
        %s263 = sand.u32 %s123, 1
        %s264 = scalar_lea.sflag [#allocation4], %s263
        %s265 = sand.u32 %s123, 1
        %s266 = smul.addr %s265, 16
        %s267 = scalar_lea.vmem [#allocation8], %s266
        // Predicated region
        $region45: #{tpu_custom_call.1} parent=31 // pred_check
          %p268 = pneg %p133
        $region46: #{tpu_custom_call.1} parent=31 // pred_check_branch
          %270 = sbr.rel (%p268) target = $region48
        $region47: #{tpu_custom_call.1} parent=31 // pred_region
          %s271 = smul.u32 2, %s26
          %s273 = ssub.s32 256, 256
          %274 = vsyncadd %s264, %s273
          %s275 = sadd.s32 %s25, %s271
          %s276 = smul.addr %s275, 128
          %s277 = scalar_lea.hbm %s3, %s276
          %s278 = sshll.u32 %s267, 4
          %s279 = int_to_ptr.vmem [resolvable:$true] %s278
          %284 = dma.vmem_to_hbm [thread:$0]  %s279, 256, %s277, %s264, 128, 128, 8
        $region48: #{tpu_custom_call.1} parent=31 // pred_fallthru
          _
      $region32: #{tpu_custom_call.1} parent=5 // pred_fallthru
        _
      %p285 = scmp.le.s32.totalorder 2, %s16
      // Predicated region
      $region49: #{tpu_custom_call.1} parent=5 // pred_check
        %p286 = pneg %p285
      $region50: #{tpu_custom_call.1} parent=5 // pred_check_branch
        %288 = sbr.rel (%p286) target = $region52
      $region51: #{tpu_custom_call.1} parent=5 // pred_region
        %s289 = ssub.s32 %s16, 2
        // Predicated region
        $region53: #{tpu_custom_call.1} parent=51 // pred_check
          %p290 = pneg %p139
        $region54: #{tpu_custom_call.1} parent=51 // pred_check_branch
          %292 = sbr.rel (%p290) target = $region56
        $region55: #{tpu_custom_call.1} parent=51 // pred_region
          %s293 = sand.u32 %s124, 1
          %s294 = scalar_lea.sflag [#allocation4], %s293
          %s295 = sand.u32 %s124, 1
          %s296 = smul.addr %s295, 16
          %s297 = scalar_lea.vmem [#allocation8], %s296
          %298 = dma.done %s294, 256
        $region56: #{tpu_custom_call.1} parent=51 // pred_fallthru
          _
      $region52: #{tpu_custom_call.1} parent=5 // pred_fallthru
        _
    $region6: #{tpu_custom_call.1} parent=1 // loop_footer
      %s20 = sadd.s32 1, %s16
    $region7: #{tpu_custom_call.1} parent=1 // loop_footer_branch
      %15 = sbr.rel target = $region3
    $region8: #{tpu_custom_call.1} parent=1 // loop_exit
      _
    %299 = vsyncpa [#allocation3], 1
    %s300 = scalar_lea.sflag [#allocation3], 1
    %301 = vsyncpa %s300, 1
    %302 = vsyncpa [#allocation6], 1
    %303 = vsyncpa [#allocation4], 1
    %s304 = scalar_lea.sflag [#allocation4], 1
    %305 = vsyncpa %s304, 1

</llo_original>
